<compile_context>
chip_gen: v7x
topology: tpu7x:2x2x1
jax: 0.10.0
libtpu: 0.0.40
codegen_flags: <defaults>
</compile_context>

<pallas_src>
import functools
import math

import jax
import jax.numpy as jnp
from jax import lax
from jax.experimental import pallas as pl
from jax.experimental.pallas import tpu as pltpu


# ---------------------------------------------------------------------------
# Tiling helpers
# ---------------------------------------------------------------------------

def _tpu_vmem_capacity_bytes():
    try:
        return int(pltpu.get_tpu_info().vmem_capacity_bytes)
    except Exception:
        return 64 << 20  # conservative fallback: v7x per-TC VMEM


def _block_budget_bytes(vmem_cap):
    # One input block. The apply pass keeps 4 such blocks live (2x input +
    # 2x output double-buffered), so vmem_cap/10 leaves >2x headroom.
    return max(1 << 20, min(8 << 20, vmem_cap // 10))


def _vmem_limit_bytes(live_bytes, vmem_cap):
    return int(min(max(live_bytes + (4 << 20), 16 << 20), (vmem_cap * 3) // 4))


def _row_multiple(itemsize):
    # Sublane packing: 8 rows/vreg for 32-bit, 16 for 16-bit, 32 for 8-bit.
    return 8 * max(1, 4 // itemsize)


def _pick_lane_block(s_total, cap):
    """Lane-block width <= cap; prefer a multiple of 128 that divides S."""
    if s_total <= cap:
        return s_total, False
    b = (cap // 128) * 128
    while b >= 128:
        if s_total % b == 0:
            return b, False
        b -= 128
    return (cap // 128) * 128, True


def _stats_tiles(n_channels, s_total, itemsize, budget):
    row_mult = _row_multiple(itemsize)
    if n_channels * 128 * itemsize <= budget:
        ct = n_channels
    else:  # very wide channel counts: tile C so blocks still fit the budget
        ct = max(row_mult, (budget // (128 * itemsize)) // row_mult * row_mult)
    cap = max(128, (budget // (ct * itemsize)) // 128 * 128)
    bs, need_mask = _pick_lane_block(s_total, cap)
    return ct, bs, need_mask


def _apply_tiles(n_rows, s_total, itemsize, budget):
    row_mult = _row_multiple(itemsize)
    lane_cap = max(128, (budget // (row_mult * itemsize)) // 128 * 128)
    bs = s_total if s_total <= lane_cap else lane_cap
    rt_cap = max(row_mult, (budget // (bs * itemsize)) // row_mult * row_mult)
    rt = n_rows if n_rows <= rt_cap else rt_cap
    return rt, bs


# ---------------------------------------------------------------------------
# Kernels
# ---------------------------------------------------------------------------

def _bn_partial_stats_kernel(x_ref, sum_ref, sq_ref, *, s_total, bs, need_mask):
    """Accumulate per-(batch, channel-tile) sum / sum-of-squares over S blocks."""
    s_i = pl.program_id(2)

    @pl.when(s_i == 0)
    def _():
        sum_ref[...] = jnp.zeros_like(sum_ref)
        sq_ref[...] = jnp.zeros_like(sq_ref)

    x = x_ref[0].astype(jnp.float32)                       # (Ct, bs)

    if need_mask:
        last = pl.num_programs(2) - 1

        @pl.when(s_i != last)                              # fast path, no mask
        def _():
            sum_ref[0] += jnp.sum(x, axis=1, keepdims=True)
            sq_ref[0] += jnp.sum(x * x, axis=1, keepdims=True)

        @pl.when(s_i == last)                              # masked last block
        def _():
            lane = lax.broadcasted_iota(jnp.int32, x.shape, 1) + s_i * bs
            xm = jnp.where(lane < s_total, x, 0.0)
            sum_ref[0] += jnp.sum(xm, axis=1, keepdims=True)
            sq_ref[0] += jnp.sum(xm * xm, axis=1, keepdims=True)
    else:
        sum_ref[0] += jnp.sum(x, axis=1, keepdims=True)
        sq_ref[0] += jnp.sum(x * x, axis=1, keepdims=True)


def _bn_apply_kernel(x_ref, scale_ref, shift_ref, o_ref):
    """y = x * scale + shift with per-row (Rt, 1) scale/shift broadcast."""
    x = x_ref[...].astype(jnp.float32)                     # (Rt, bs)
    o_ref[...] = (x * scale_ref[...] + shift_ref[...]).astype(o_ref.dtype)


# ---------------------------------------------------------------------------
# Wrapper
# ---------------------------------------------------------------------------

def batch_norm(x, weight=None, bias=None, *, eps=1e-5):
    """Training-mode batch norm over channel dim 1 (PyTorch NCHW / NCDHW)."""
    N, C = x.shape[0], x.shape[1]
    S = math.prod(x.shape[2:])
    itemsize = x.dtype.itemsize
    count = N * S

    if weight is None:
        weight = jnp.ones((C,), jnp.float32)
    if bias is None:
        bias = jnp.zeros((C,), jnp.float32)
    g = weight.astype(jnp.float32).reshape(C, 1)
    b = bias.astype(jnp.float32).reshape(C, 1)

    vmem_cap = _tpu_vmem_capacity_bytes()
    budget = _block_budget_bytes(vmem_cap)

    # ---- Pass 1: per-(n, channel-tile) partial sum / sum-of-squares --------
    x3 = x.reshape(N, C, S)                  # contiguous reshape, no HBM copy
    ct, bs, need_mask = _stats_tiles(C, S, itemsize, budget)
    grid1 = (N, pl.cdiv(C, ct), pl.cdiv(S, bs))
    stats_live = 2 * ct * bs * itemsize + 8 * ct * 4 + (1 << 20)

    psum, psq = pl.pallas_call(
        functools.partial(_bn_partial_stats_kernel,
                          s_total=S, bs=bs, need_mask=need_mask),
        out_shape=(jax.ShapeDtypeStruct((N, C, 1), jnp.float32),
                   jax.ShapeDtypeStruct((N, C, 1), jnp.float32)),
        grid_spec=pltpu.PrefetchScalarGridSpec(
            num_scalar_prefetch=0,
            grid=grid1,
            in_specs=[pl.BlockSpec((1, ct, bs), lambda n, c, s: (n, c, s))],
            out_specs=[pl.BlockSpec((1, ct, 1), lambda n, c, s: (n, c, 0)),
                       pl.BlockSpec((1, ct, 1), lambda n, c, s: (n, c, 0))]),
        compiler_params=pltpu.CompilerParams(
            dimension_semantics=("parallel", "parallel", "arbitrary"),
            vmem_limit_bytes=_vmem_limit_bytes(stats_live, vmem_cap)),
    )(x3)

    # ---- Finalize scale/shift (tiny XLA op over C elements) ----------------
    inv_count = 1.0 / float(count)
    sum_c = jnp.sum(psum, axis=0)                           # (C, 1)
    sq_c = jnp.sum(psq, axis=0)                             # (C, 1)
    mean = sum_c * inv_count
    var = jnp.maximum(sq_c * inv_count - mean * mean, 0.0)  # clamp cancellation
    scale = g * lax.rsqrt(var + eps)                        # (C, 1)
    shift = b - mean * scale                                # (C, 1)

    # ---- Pass 2: y = x*scale + shift on a sublane-dense (N*C, S) layout ----
    NC = N * C
    x2 = x.reshape(NC, S)
    scale_rows = jnp.tile(scale, (N, 1))                    # (N*C, 1)
    shift_rows = jnp.tile(shift, (N, 1))
    rt, bs2 = _apply_tiles(NC, S, itemsize, budget)
    grid2 = (pl.cdiv(NC, rt), pl.cdiv(S, bs2))
    apply_live = 4 * rt * bs2 * itemsize + 8 * rt * 4 + (1 << 20)

    y2 = pl.pallas_call(
        _bn_apply_kernel,
        out_shape=jax.ShapeDtypeStruct((NC, S), x.dtype),
        grid_spec=pltpu.PrefetchScalarGridSpec(
            num_scalar_prefetch=0,
            grid=grid2,
            in_specs=[pl.BlockSpec((rt, bs2), lambda r, s: (r, s)),
                      pl.BlockSpec((rt, 1), lambda r, s: (r, 0)),
                      pl.BlockSpec((rt, 1), lambda r, s: (r, 0))],
            out_specs=pl.BlockSpec((rt, bs2), lambda r, s: (r, s))),
        compiler_params=pltpu.CompilerParams(
            dimension_semantics=("parallel", "parallel"),
            vmem_limit_bytes=_vmem_limit_bytes(apply_live, vmem_cap)),
    )(x2, scale_rows, shift_rows)

    return y2.reshape(x.shape)


class BatchNorm:
    """JAX/Pallas equivalent of the PyTorch BatchNorm wrapper (training-mode forward)."""

    def __init__(self, type, n_channels, eps=1e-5, momentum=0.1, affine=True,
                 track_running_stats=True):
        if ("2d" not in type.lower()) and ("3d" not in type.lower()):
            raise ValueError(f"unknown batchnorm type: {type}")
        self.n_channels = n_channels
        self.eps = eps
        self.momentum = momentum
        self.weight = jnp.ones((n_channels,), jnp.float32) if affine else None
        self.bias = jnp.zeros((n_channels,), jnp.float32) if affine else None
        # TODO(synk): running_mean/running_var momentum updates and eval-mode
        # (track_running_stats) normalization are not implemented; forward
        # matches PyTorch training-mode behaviour (batch statistics).

    def __call__(self, x):
        return batch_norm(x, self.weight, self.bias, eps=self.eps)


if __name__ == "__main__":
    key = jax.random.PRNGKey(0)
    k2, k3, kw, kb = jax.random.split(key, 4)

    def ref_bn(x, w, b, eps):
        axes = (0,) + tuple(range(2, x.ndim))
        mean = x.mean(axis=axes, keepdims=True)
        var = x.var(axis=axes, keepdims=True)   # biased, as PyTorch normalizes with
        shp = (1, x.shape[1]) + (1,) * (x.ndim - 2)
        return (x - mean) / jnp.sqrt(var + eps) * w.reshape(shp) + b.reshape(shp)

    # ---- 2d case: NCHW, with non-trivial affine params ----
    x2d = jax.random.normal(k2, (2, 4, 16, 16), dtype=jnp.float32)
    bn2d = BatchNorm("2d", 4)
    bn2d.weight = jax.random.normal(kw, (4,), dtype=jnp.float32)
    bn2d.bias = jax.random.normal(kb, (4,), dtype=jnp.float32)
    y2d = jax.block_until_ready(bn2d(x2d))
    ref2d = ref_bn(x2d, bn2d.weight, bn2d.bias, bn2d.eps)
    assert y2d.shape == x2d.shape and y2d.dtype == x2d.dtype
    assert jnp.allclose(y2d, ref2d, atol=1e-4, rtol=1e-4)

    # ---- 3d case: NCDHW, default affine (gamma=1, beta=0) ----
    x3d = jax.random.normal(k3, (2, 3, 4, 8, 8), dtype=jnp.float32)
    bn3d = BatchNorm("3d", 3)
    y3d = jax.block_until_ready(bn3d(x3d))
    ref3d = ref_bn(x3d, bn3d.weight, bn3d.bias, bn3d.eps)
    assert y3d.shape == x3d.shape and y3d.dtype == x3d.dtype
    assert jnp.allclose(y3d, ref3d, atol=1e-4, rtol=1e-4)

    print("KERNEL_OK")
</pallas_src>

<mosaic_0001>
module attributes {stable_mosaic.version = 11 : i64} {
  func.func @_bn_partial_stats_kernel(%arg0: i32, %arg1: i32, %arg2: i32, %arg3: memref<1x4x256xf32, #tpu.memory_space<vmem>>, %arg4: memref<1x4x1xf32, #tpu.memory_space<vmem>>, %arg5: memref<1x4x1xf32, #tpu.memory_space<vmem>>) attributes {dimension_semantics = [#tpu.dimension_semantics<parallel>, #tpu.dimension_semantics<parallel>, #tpu.dimension_semantics<arbitrary>], iteration_bounds = array<i64: 2, 1, 1>, scalar_prefetch = 0 : i64, scratch_operands = 0 : i64, tpu.core_type = #tpu.core_type<tc>, window_params = [{transform_indices = @transform_0, window_bounds = array<i64: 1, 4, 256>}, {transform_indices = @transform_1, window_bounds = array<i64: 1, 4, 1>}, {transform_indices = @transform_2, window_bounds = array<i64: 1, 4, 1>}]} {
    %c0_i32 = arith.constant 0 : i32
    %0 = arith.cmpi eq, %arg2, %c0_i32 : i32
    %1 = arith.extui %0 : i1 to i32
    %c0_i32_0 = arith.constant 0 : i32
    %2 = arith.cmpi ne, %1, %c0_i32_0 : i32
    scf.if %2 {
      %cst_16 = arith.constant 0.000000e+00 : f32
      %22 = vector.broadcast %cst_16 : f32 to vector<1x4x1xf32>
      %c0_17 = arith.constant 0 : index
      %c0_18 = arith.constant 0 : index
      %c0_19 = arith.constant 0 : index
      %23 = vector.load %arg4[%c0_17, %c0_18, %c0_19] : memref<1x4x1xf32, #tpu.memory_space<vmem>>, vector<1x4x1xf32>
      tpu.vector_store %arg4[%c0_17, %c0_18, %c0_19], %22 {strides = array<i32>} : memref<1x4x1xf32, #tpu.memory_space<vmem>>, vector<1x4x1xf32>,
      %cst_20 = arith.constant 0.000000e+00 : f32
      %24 = vector.broadcast %cst_20 : f32 to vector<1x4x1xf32>
      %c0_21 = arith.constant 0 : index
      %c0_22 = arith.constant 0 : index
      %c0_23 = arith.constant 0 : index
      %25 = vector.load %arg5[%c0_21, %c0_22, %c0_23] : memref<1x4x1xf32, #tpu.memory_space<vmem>>, vector<1x4x1xf32>
      tpu.vector_store %arg5[%c0_21, %c0_22, %c0_23], %24 {strides = array<i32>} : memref<1x4x1xf32, #tpu.memory_space<vmem>>, vector<1x4x1xf32>,
    } else {
    }
    %c0 = arith.constant 0 : index
    %c0_1 = arith.constant 0 : index
    %c0_2 = arith.constant 0 : index
    %3 = vector.load %arg3[%c0, %c0_1, %c0_2] : memref<1x4x256xf32, #tpu.memory_space<vmem>>, vector<1x4x256xf32>
    %4 = vector.shape_cast %3 : vector<1x4x256xf32> to vector<4x256xf32>
    %c0_3 = arith.constant 0 : index
    %c0_4 = arith.constant 0 : index
    %c0_5 = arith.constant 0 : index
    %5 = vector.load %arg4[%c0_3, %c0_4, %c0_5] : memref<1x4x1xf32, #tpu.memory_space<vmem>>, vector<1x4x1xf32>
    %6 = vector.shape_cast %5 : vector<1x4x1xf32> to vector<4x1xf32>
    %cst = arith.constant dense<0.000000e+00> : vector<4xf32>
    %7 = vector.multi_reduction <add>, %4, %cst [1] : vector<4x256xf32> to vector<4xf32>
    %8 = vector.shape_cast %7 : vector<4xf32> to vector<4x1xf32>
    %9 = arith.addf %6, %8 : vector<4x1xf32>
    %c0_6 = arith.constant 0 : index
    %c0_7 = arith.constant 0 : index
    %c0_8 = arith.constant 0 : index
    %10 = vector.load %arg4[%c0_6, %c0_7, %c0_8] : memref<1x4x1xf32, #tpu.memory_space<vmem>>, vector<1x4x1xf32>
    %11 = vector.shape_cast %10 : vector<1x4x1xf32> to vector<4x1xf32>
    %12 = vector.shape_cast %9 : vector<4x1xf32> to vector<1x4x1xf32>
    tpu.vector_store %arg4[%c0_6, %c0_7, %c0_8], %12 {strides = array<i32>} : memref<1x4x1xf32, #tpu.memory_space<vmem>>, vector<1x4x1xf32>,
    %c0_9 = arith.constant 0 : index
    %c0_10 = arith.constant 0 : index
    %c0_11 = arith.constant 0 : index
    %13 = vector.load %arg5[%c0_9, %c0_10, %c0_11] : memref<1x4x1xf32, #tpu.memory_space<vmem>>, vector<1x4x1xf32>
    %14 = vector.shape_cast %13 : vector<1x4x1xf32> to vector<4x1xf32>
    %15 = arith.mulf %4, %4 : vector<4x256xf32>
    %cst_12 = arith.constant dense<0.000000e+00> : vector<4xf32>
    %16 = vector.multi_reduction <add>, %15, %cst_12 [1] : vector<4x256xf32> to vector<4xf32>
    %17 = vector.shape_cast %16 : vector<4xf32> to vector<4x1xf32>
    %18 = arith.addf %14, %17 : vector<4x1xf32>
    %c0_13 = arith.constant 0 : index
    %c0_14 = arith.constant 0 : index
    %c0_15 = arith.constant 0 : index
    %19 = vector.load %arg5[%c0_13, %c0_14, %c0_15] : memref<1x4x1xf32, #tpu.memory_space<vmem>>, vector<1x4x1xf32>
    %20 = vector.shape_cast %19 : vector<1x4x1xf32> to vector<4x1xf32>
    %21 = vector.shape_cast %18 : vector<4x1xf32> to vector<1x4x1xf32>
    tpu.vector_store %arg5[%c0_13, %c0_14, %c0_15], %21 {strides = array<i32>} : memref<1x4x1xf32, #tpu.memory_space<vmem>>, vector<1x4x1xf32>,
    return
  }
  func.func @transform_0(%arg0: i32, %arg1: i32, %arg2: i32) -> (i32, i32, i32) {
    %c0_i32 = arith.constant 0 : i32
    return %arg0, %arg1, %arg2 : i32, i32, i32
  }
  func.func @transform_1(%arg0: i32, %arg1: i32, %arg2: i32) -> (i32, i32, i32) {
    %c0_i32 = arith.constant 0 : i32
    %c0_i32_0 = arith.constant 0 : i32
    return %arg0, %arg1, %c0_i32 : i32, i32, i32
  }
  func.func @transform_2(%arg0: i32, %arg1: i32, %arg2: i32) -> (i32, i32, i32) {
    %c0_i32 = arith.constant 0 : i32
    %c0_i32_0 = arith.constant 0 : i32
    return %arg0, %arg1, %c0_i32 : i32, i32, i32
  }
}

</mosaic_0001>

<llo_original>
// kernel: tpu_custom_call.1
$region0: #{tpu_custom_call.1}
  #allocation0 [shape = 'u32[]', space=smem, size = 0x4, offset = 0x4, fixed_abs, tag = 'smem constant byte address 0x4 - core index']
  #allocation1 [shape = 'u32[144,128]{1,0:T(1,128)}', space=vmem, size = 0x12000, scoped, tag = 'internal scratch']
  %s0 = inlined_call_operand.hbm [shape: f32[2,4,256], index: 0, kind: input, shape index: {}]
  %s1 = inlined_call_operand.vmem [shape: f32[2,4,1], index: 1, kind: output, shape index: {0}]
  %s2 = inlined_call_operand.vmem [shape: f32[2,4,1], index: 2, kind: output, shape index: {1}]
  %3 = xla_tuple %s1, %s2
  %s4 = sld [smem:[#allocation0]]
  $region53: #{tpu_custom_call.1} parent=0
    _
  %s6 = ssub.s32 1, %s4
  %s7 = scalar_select 0, %s6, %s4
  $region1: #{tpu_custom_call.1} parent=0
    #allocation2 [shape = 'u8[8192]{0}', space=vmem, size = 0x2000, scoped, tag = 'input window, operand 0']
    #allocation3 [shape = 's32[2]{0}', space=sflag, size = 0x8, scoped, tag = 'scoped memory for tpu_custom_call.1']
    %8 = vsyncpa [#allocation3], 0
    %s9 = scalar_lea.sflag [#allocation3], 1
    %10 = vsyncpa %s9, 0
    loop: start=0, step=1, limit=4
    $region2: #{tpu_custom_call.1} parent=1 // loop_pre_header
      _
    $region3: #{tpu_custom_call.1} parent=1 // loop_header
      %s12 = sphi 0, %s16
      %p13 = scmp.ge.s32.totalorder %s12, 4
      %s19 = sphi 0, %s38
      %s20 = sphi 0, %s34
      %s21 = sphi 0, %s30
      %s22 = sphi 0, %s19
      %s23 = sphi 0, %s20
      %s24 = sphi 0, %s21
      %s25 = sphi 0, %s22
      %s26 = sphi 0, %s23
      %s27 = sphi 0, %s24
      %s45 = sphi 0, %s47
      %s48 = sphi 0, %s45
      %s49 = sphi 0, %s48
      %s65 = sphi 0, %s49
      %s73 = sphi 0, %s75
      %s76 = sphi 0, %s73
      %s77 = sphi 0, %s76
      %s93 = sphi 0, %s77
      %s101 = sphi 0, %s103
      %s104 = sphi 0, %s101
      %s105 = sphi 0, %s104
      %s121 = sphi 0, %s105
    $region4: #{tpu_custom_call.1} parent=1 // loop_header_branch
      %15 = sbr.rel (%p13) target = $region8
    $region5: #{tpu_custom_call.1} parent=1 // loop_body
      %s17 = ssub.s32 %s12, 1
      %s18 = ssub.s32 %s12, 2
      %s28 = sadd.s32 1, %s21
      %p29 = scmp.ge.s32.totalorder %s28, 1
      %s30 = scalar_select %p29, 0, %s28
      %s31 = sadd.s32 1, %s20
      %s32 = scalar_select %p29, %s31, %s20
      %p33 = scmp.ge.s32.totalorder %s32, 1
      %s34 = scalar_select %p33, 0, %s32
      %s35 = sadd.s32 1, %s19
      %s36 = scalar_select %p33, %s35, %s19
      %p37 = scmp.ge.s32.totalorder %s36, 2
      %s38 = scalar_select %p37, 0, %s36
      %s39 = ssub.s32 %s19, %s38
      %s40 = ssub.s32 %s20, %s34
      %s41 = sor.u32 %s39, %s40
      %s42 = ssub.s32 %s21, %s30
      %s43 = sor.u32 %s41, %s42
      %p44 = scmp.eq.s32.totalorder %s43, 0
      %s46 = sadd.s32 %s45, 1
      %s47 = scalar_select %p44, %s45, %s46
      %p50 = pneg %p44
      %p51 = scmp.eq.s32.totalorder %s12, 1
      %p52 = por %p50, %p51
      %p53 = scmp.ne.s32.totalorder %s45, %s48
      %p54 = scmp.eq.s32.totalorder %s12, 0
      %p55 = por %p53, %p54
      %p56 = scmp.ne.s32.totalorder %s45, %s48
      %p57 = scmp.eq.s32.totalorder %s17, 1
      %p58 = por %p56, %p57
      %p59 = scmp.ne.s32.totalorder %s48, %s49
      %p60 = scmp.eq.s32.totalorder %s17, 0
      %p61 = por %p59, %p60
      %p62 = scmp.ne.s32.totalorder %s48, %s49
      %p63 = scmp.eq.s32.totalorder %s18, 1
      %p64 = por %p62, %p63
      %p66 = scmp.ne.s32.totalorder %s49, %s65
      %p67 = scmp.eq.s32.totalorder %s18, 0
      %p68 = por %p66, %p67
      %s69 = ssub.s32 %s19, %s38
      %s70 = ssub.s32 %s20, %s34
      %s71 = sor.u32 %s69, %s70
      %p72 = scmp.eq.s32.totalorder %s71, 0
      %s74 = sadd.s32 %s73, 1
      %s75 = scalar_select %p72, %s73, %s74
      %p78 = pneg %p72
      %p79 = scmp.eq.s32.totalorder %s12, 1
      %p80 = por %p78, %p79
      %p81 = scmp.ne.s32.totalorder %s73, %s76
      %p82 = scmp.eq.s32.totalorder %s12, 0
      %p83 = por %p81, %p82
      %p84 = scmp.ne.s32.totalorder %s73, %s76
      %p85 = scmp.eq.s32.totalorder %s17, 1
      %p86 = por %p84, %p85
      %p87 = scmp.ne.s32.totalorder %s76, %s77
      %p88 = scmp.eq.s32.totalorder %s17, 0
      %p89 = por %p87, %p88
      %p90 = scmp.ne.s32.totalorder %s76, %s77
      %p91 = scmp.eq.s32.totalorder %s18, 1
      %p92 = por %p90, %p91
      %p94 = scmp.ne.s32.totalorder %s77, %s93
      %p95 = scmp.eq.s32.totalorder %s18, 0
      %p96 = por %p94, %p95
      %s97 = ssub.s32 %s19, %s38
      %s98 = ssub.s32 %s20, %s34
      %s99 = sor.u32 %s97, %s98
      %p100 = scmp.eq.s32.totalorder %s99, 0
      %s102 = sadd.s32 %s101, 1
      %s103 = scalar_select %p100, %s101, %s102
      %p106 = pneg %p100
      %p107 = scmp.eq.s32.totalorder %s12, 1
      %p108 = por %p106, %p107
      %p109 = scmp.ne.s32.totalorder %s101, %s104
      %p110 = scmp.eq.s32.totalorder %s12, 0
      %p111 = por %p109, %p110
      %p112 = scmp.ne.s32.totalorder %s101, %s104
      %p113 = scmp.eq.s32.totalorder %s17, 1
      %p114 = por %p112, %p113
      %p115 = scmp.ne.s32.totalorder %s104, %s105
      %p116 = scmp.eq.s32.totalorder %s17, 0
      %p117 = por %p115, %p116
      %p118 = scmp.ne.s32.totalorder %s104, %s105
      %p119 = scmp.eq.s32.totalorder %s18, 1
      %p120 = por %p118, %p119
      %p122 = scmp.ne.s32.totalorder %s105, %s121
      %p123 = scmp.eq.s32.totalorder %s18, 0
      %p124 = por %p122, %p123
      %p125 = scmp.le.s32.totalorder 1, %s12
      %p126 = scmp.lt.s32.totalorder %s12, 3
      %p127 = pnand %p125, %p126
      %p128 = pneg %p127
      // Predicated region
      $region9: #{tpu_custom_call.1} parent=5 // pred_check
        _
      $region10: #{tpu_custom_call.1} parent=5 // pred_check_branch
        %130 = sbr.rel (%p127) target = $region12
      $region11: #{tpu_custom_call.1} parent=5 // pred_region
        %s131 = ssub.s32 %s12, 1
      $region12: #{tpu_custom_call.1} parent=5 // pred_fallthru
        _
      %p132 = scmp.lt.s32.totalorder %s12, 2
      // Predicated region
      $region13: #{tpu_custom_call.1} parent=5 // pred_check
        %p133 = pneg %p132
      $region14: #{tpu_custom_call.1} parent=5 // pred_check_branch
        %135 = sbr.rel (%p133) target = $region16
      $region15: #{tpu_custom_call.1} parent=5 // pred_region
        // Predicated region
        $region17: #{tpu_custom_call.1} parent=15 // pred_check
          %p136 = pneg %p55
        $region18: #{tpu_custom_call.1} parent=15 // pred_check_branch
          %138 = sbr.rel (%p136) target = $region20
        $region19: #{tpu_custom_call.1} parent=15 // pred_region
          %s139 = sand.u32 %s45, 1
          %s140 = scalar_lea.sflag [#allocation3], %s139
          %s141 = sand.u32 %s45, 1
          %s142 = smul.addr %s141, 8
          %s143 = scalar_lea.vmem [#allocation2], %s142
          %s144 = smul.u32 2, %s21
          %s146 = ssub.s32 128, 128
          %147 = vsyncadd %s140, %s146
          %s148 = smul.addr %s20, 2
          %s149 = sadd.s32 %s144, %s148
          %s150 = smul.addr %s19, 2
          %s151 = sadd.s32 %s149, %s150
          %s152 = smul.addr %s151, 64
          %s153 = scalar_lea.hbm %s0, %s152
          %s155 = sshll.u32 %s143, 4
          %s156 = int_to_ptr.vmem [resolvable:$true] %s155
          %158 = dma.hbm_to_vmem [thread:$0]  %s153, 128, %s156, %s140
        $region20: #{tpu_custom_call.1} parent=15 // pred_fallthru
          _
      $region16: #{tpu_custom_call.1} parent=5 // pred_fallthru
        _
      %p159 = scmp.le.s32.totalorder 1, %s12
      %p160 = scmp.lt.s32.totalorder %s12, 3
      %p161 = pnand %p159, %p160
      %p162 = pneg %p161
      // Predicated region
      $region21: #{tpu_custom_call.1} parent=5 // pred_check
        _
      $region22: #{tpu_custom_call.1} parent=5 // pred_check_branch
        %164 = sbr.rel (%p161) target = $region24
      $region23: #{tpu_custom_call.1} parent=5 // pred_region
        %s165 = ssub.s32 %s12, 1
        %s166 = sand.u32 %s48, 1
        %s167 = scalar_lea.sflag [#allocation3], %s166
        %s168 = sand.u32 %s48, 1
        %s169 = smul.addr %s168, 8
        %s170 = scalar_lea.vmem [#allocation2], %s169
        // Predicated region
        $region25: #{tpu_custom_call.1} parent=23 // pred_check
          %p171 = pneg %p61
        $region26: #{tpu_custom_call.1} parent=23 // pred_check_branch
          %173 = sbr.rel (%p171) target = $region28
        $region27: #{tpu_custom_call.1} parent=23 // pred_region
          %174 = dma.done %s167, 128
        $region28: #{tpu_custom_call.1} parent=23 // pred_fallthru
          _
        %s175 = sand.u32 %s48, 1
        %s176 = scalar_lea.sflag [#allocation3], %s175
        %s177 = sand.u32 %s48, 1
        %s178 = smul.addr %s177, 8
        %s179 = scalar_lea.vmem [#allocation2], %s178
        %p180 = pneg %p61
        %p181 = pneg %p58
        %p182 = pneg %p89
        %p183 = pneg %p86
        %p184 = scmp.lt.s32.totalorder %s22, 1
        %s185 = scalar_select %p184, %s22, 1
        %p186 = scmp.lt.s32.totalorder %s23, 0
        %s187 = scalar_select %p186, %s23, 0
        %s188 = sadd.s32 %s187, %s185
        %s189 = smul.addr %s188, 4
        %s190 = scalar_lea.vmem %s1, %s189
        %p191 = pneg %p117
        %p192 = pneg %p114
        %p193 = scmp.lt.s32.totalorder %s22, 1
        %s194 = scalar_select %p193, %s22, 1
        %p195 = scmp.lt.s32.totalorder %s23, 0
        %s196 = scalar_select %p195, %s23, 0
        %s197 = sadd.s32 %s196, %s194
        %s198 = smul.addr %s197, 4
        %s199 = scalar_lea.vmem %s2, %s198
        %s200 = smul.u32 2, %s24
        %p201 = scmp.lt.s32.totalorder %s22, 1
        %s202 = scalar_select %p201, %s22, 1
        %p203 = scmp.lt.s32.totalorder %s23, 0
        %s204 = scalar_select %p203, %s23, 0
        %s205 = sadd.s32 %s204, %s202
        %s206 = smul.addr %s205, 4
        %s207 = scalar_lea.vmem %s1, %s206
        %p208 = scmp.lt.s32.totalorder %s22, 1
        %s209 = scalar_select %p208, %s22, 1
        %p210 = scmp.lt.s32.totalorder %s23, 0
        %s211 = scalar_select %p210, %s23, 0
        %s212 = sadd.s32 %s211, %s209
        %s213 = smul.addr %s212, 4
        %s214 = scalar_lea.vmem %s2, %s213
        %p215 = scmp.eq.s32.totalorder %s24, 0
        // Predicated region
        $region29: #{tpu_custom_call.1} parent=23 // pred_check
          %p216 = pneg %p215
        $region30: #{tpu_custom_call.1} parent=23 // pred_check_branch
          %218 = sbr.rel (%p216) target = $region32
        $region31: #{tpu_custom_call.1} parent=23 // pred_region
          %vm219 = vcmask 3072
          %220 = vst.msk [vmem:[%s207] sm:$0xf] %vm219, 0.0
          %221 = vst.msk [vmem:[%s214] sm:$0xf] %vm219, 0.0
        $region32: #{tpu_custom_call.1} parent=23 // pred_fallthru
          _
        %v222 = vld [vmem:[%s170] sm:$0xff]
        %v223 = vld [vmem:[%s207] sm:$0xf]
        %v225 = vcombine.high %v222, %v222
        %vm227 = vcmask 1043456
        %v228 = vsel %vm227, %v222, 0.0
        %v229 = vsel %vm227, %v225, 0.0
        %v230 = vadd.f32 %v228, %v229
        %231 = vadd.xlane.f32.xlu0 %v230
        %v232 = vpop.xlane.xlu0 %231
        %v233 = vadd.f32 %v223, %v232
        %vm234 = vcmask 3072
        %235 = vst.msk [vmem:[%s207] sm:$0xf] %vm234, %v233
        %v236 = vld [vmem:[%s214] sm:$0xf]
        %v237 = vmul.f32 %v222, %v222
        %v239 = vcombine.high %v237, %v237
        %v241 = vsel %vm227, %v237, 0.0
        %v242 = vsel %vm227, %v239, 0.0
        %v243 = vadd.f32 %v241, %v242
        %244 = vadd.xlane.f32.xlu0 %v243
        %v245 = vpop.xlane.xlu0 %244
        %v246 = vadd.f32 %v236, %v245
        %247 = vst.msk [vmem:[%s214] sm:$0xf] %vm234, %v246
        %p248 = scmp.lt.s32.totalorder %s22, 1
        %s249 = scalar_select %p248, %s22, 1
        %p250 = scmp.lt.s32.totalorder %s23, 0
        %s251 = scalar_select %p250, %s23, 0
        %s252 = sadd.s32 %s251, %s249
        %s253 = smul.addr %s252, 4
        %s254 = scalar_lea.vmem %s1, %s253
        %p255 = scmp.lt.s32.totalorder %s22, 1
        %s256 = scalar_select %p255, %s22, 1
        %p257 = scmp.lt.s32.totalorder %s23, 0
        %s258 = scalar_select %p257, %s23, 0
        %s259 = sadd.s32 %s258, %s256
        %s260 = smul.addr %s259, 4
        %s261 = scalar_lea.vmem %s2, %s260
        // Predicated region
        $region33: #{tpu_custom_call.1} parent=23 // pred_check
          %p262 = pneg %p86
        $region34: #{tpu_custom_call.1} parent=23 // pred_check_branch
          %264 = sbr.rel (%p262) target = $region36
        $region35: #{tpu_custom_call.1} parent=23 // pred_region
          _
        $region36: #{tpu_custom_call.1} parent=23 // pred_fallthru
          _
        // Predicated region
        $region37: #{tpu_custom_call.1} parent=23 // pred_check
          %p265 = pneg %p114
        $region38: #{tpu_custom_call.1} parent=23 // pred_check_branch
          %267 = sbr.rel (%p265) target = $region40
        $region39: #{tpu_custom_call.1} parent=23 // pred_region
          _
        $region40: #{tpu_custom_call.1} parent=23 // pred_fallthru
          _
      $region24: #{tpu_custom_call.1} parent=5 // pred_fallthru
        _
      %p268 = scmp.le.s32.totalorder 2, %s12
      // Predicated region
      $region41: #{tpu_custom_call.1} parent=5 // pred_check
        %p269 = pneg %p268
      $region42: #{tpu_custom_call.1} parent=5 // pred_check_branch
        %271 = sbr.rel (%p269) target = $region44
      $region43: #{tpu_custom_call.1} parent=5 // pred_region
        %s272 = ssub.s32 %s12, 2
        // Predicated region
        $region45: #{tpu_custom_call.1} parent=43 // pred_check
          %p273 = pneg %p92
        $region46: #{tpu_custom_call.1} parent=43 // pred_check_branch
          %275 = sbr.rel (%p273) target = $region48
        $region47: #{tpu_custom_call.1} parent=43 // pred_region
          %p276 = scmp.lt.s32.totalorder %s25, 1
          %s277 = scalar_select %p276, %s25, 1
          %p278 = scmp.lt.s32.totalorder %s26, 0
          %s279 = scalar_select %p278, %s26, 0
          %s280 = sadd.s32 %s279, %s277
          %s281 = smul.addr %s280, 4
          %s282 = scalar_lea.vmem %s1, %s281
        $region48: #{tpu_custom_call.1} parent=43 // pred_fallthru
          _
        // Predicated region
        $region49: #{tpu_custom_call.1} parent=43 // pred_check
          %p283 = pneg %p120
        $region50: #{tpu_custom_call.1} parent=43 // pred_check_branch
          %285 = sbr.rel (%p283) target = $region52
        $region51: #{tpu_custom_call.1} parent=43 // pred_region
          %p286 = scmp.lt.s32.totalorder %s25, 1
          %s287 = scalar_select %p286, %s25, 1
          %p288 = scmp.lt.s32.totalorder %s26, 0
          %s289 = scalar_select %p288, %s26, 0
          %s290 = sadd.s32 %s289, %s287
          %s291 = smul.addr %s290, 4
          %s292 = scalar_lea.vmem %s2, %s291
        $region52: #{tpu_custom_call.1} parent=43 // pred_fallthru
          _
      $region44: #{tpu_custom_call.1} parent=5 // pred_fallthru
        _
    $region6: #{tpu_custom_call.1} parent=1 // loop_footer
      %s16 = sadd.s32 1, %s12
    $region7: #{tpu_custom_call.1} parent=1 // loop_footer_branch
      %11 = sbr.rel target = $region3
    $region8: #{tpu_custom_call.1} parent=1 // loop_exit
      _
    %293 = vsyncpa [#allocation3], 1
    %s294 = scalar_lea.sflag [#allocation3], 1
    %295 = vsyncpa %s294, 1

</llo_original>
